<compile_context>
chip_gen: v7x
topology: tpu7x:2x2x1
jax: 0.10.0
libtpu: 0.0.40
codegen_flags: <defaults>
</compile_context>

<pallas_src>
import jax
import jax.numpy as jnp
from jax.experimental import pallas as pl
from jax.experimental.pallas import tpu as pltpu

HIDDEN = 64
MIN_PALLAS_BATCH = 64   # below this, the pure-JAX path is faster


def _round_up(x, m):
    return ((x + m - 1) // m) * m


def policy_kernel(x_ref, w1_ref, b1_ref, w2_ref, b2_ref, w3_ref, b3_ref,
                  mean_ref):
    cdt = w1_ref.dtype                                   # compute dtype (f32 or bf16)
    x = x_ref[...].astype(cdt)                           # (TB, S)
    z1 = jnp.dot(x, w1_ref[...],
                 preferred_element_type=jnp.float32) + b1_ref[...]
    h1 = jnp.tanh(z1.astype(cdt))                        # (TB, H)
    z2 = jnp.dot(h1, w2_ref[...],
                 preferred_element_type=jnp.float32) + b2_ref[...]
    h2 = jnp.tanh(z2.astype(cdt))                        # (TB, H)
    mean_ref[...] = (jnp.dot(h2, w3_ref[...],
                             preferred_element_type=jnp.float32)
                     + b3_ref[...]).astype(mean_ref.dtype)   # (TB, A) narrow store


def init_params(key, state_space, action_space, hidden=HIDDEN):
    """Matches PyTorch init: normal_(std=1) weights, zero biases, sigma=0.5.

    Weights are stored in the PyTorch Linear convention (out_features,
    in_features); `prepare_params` converts them once to kernel layout.
    """
    k1, k2, k3 = jax.random.split(key, 3)
    return {
        "w1": jax.random.normal(k1, (hidden, state_space), jnp.float32),
        "b1": jnp.zeros((hidden,), jnp.float32),
        "w2": jax.random.normal(k2, (hidden, hidden), jnp.float32),
        "b2": jnp.zeros((hidden,), jnp.float32),
        "w3": jax.random.normal(k3, (action_space, hidden), jnp.float32),
        "b3": jnp.zeros((action_space,), jnp.float32),
        "sigma": jnp.full((action_space,), 0.5, jnp.float32),
    }


def prepare_params(params, compute_dtype=jnp.float32):
    """One-time conversion to kernel layout: (in, out) weights, 2-D biases.
    No output padding (narrow (B, A) store is cheaper than a padded one).
    compute_dtype=jnp.bfloat16 is an optional speedup for v6e/v7x; keep f32
    on v5e / for strict parity.  Call once per parameter update, NOT per step.
    """
    H = params["w1"].shape[0]
    A = params["w3"].shape[0]
    return {
        "w1": params["w1"].T.astype(compute_dtype),       # (S, H)
        "b1": params["b1"].reshape(1, H).astype(jnp.float32),
        "w2": params["w2"].T.astype(compute_dtype),       # (H, H)
        "b2": params["b2"].reshape(1, H).astype(jnp.float32),
        "w3": params["w3"].T.astype(compute_dtype),       # (H, A)
        "b3": params["b3"].reshape(1, A).astype(jnp.float32),
        "sigma": params["sigma"],                          # (A,)
    }


def _forward_jax(x, prep):
    """Fused pure-JAX path (tiny batches); mirrors the kernel math."""
    cdt = prep["w1"].dtype
    z1 = jnp.dot(x.astype(cdt), prep["w1"],
                 preferred_element_type=jnp.float32) + prep["b1"]
    h1 = jnp.tanh(z1.astype(cdt))
    z2 = jnp.dot(h1, prep["w2"],
                 preferred_element_type=jnp.float32) + prep["b2"]
    h2 = jnp.tanh(z2.astype(cdt))
    return jnp.dot(h2, prep["w3"],
                   preferred_element_type=jnp.float32) + prep["b3"]


def _choose_tile(B, max_tile):
    tile = min(max_tile, _round_up(B, 8))
    # v7x: make sure there are >=2 grid programs so ("parallel",) can shard
    # the batch across both TensorCores (neutral on v5e/v6e: 1 TC).
    if B >= 128 and pl.cdiv(B, tile) < 2:
        tile = _round_up(pl.cdiv(B, 2), 8)
    return tile


def policy_forward(x, prep, *, tile_b=2048, min_pallas_batch=MIN_PALLAS_BATCH):
    """Returns (action_mean (B, A), sigma (A,)) — the Normal's parameters."""
    B, S = x.shape
    H = prep["w1"].shape[1]
    A = prep["w3"].shape[1]

    # sigma is x-independent: hoisted out of the kernel; stable softplus.
    sigma = jax.nn.softplus(prep["sigma"])

    if B < min_pallas_batch:
        # Single-env / tiny per-step batch: pallas launch overhead dominates.
        return _forward_jax(x, prep), sigma

    tile = _choose_tile(B, tile_b)
    grid = (pl.cdiv(B, tile),)   # no x padding: Pallas masks the partial block

    mean = pl.pallas_call(
        policy_kernel,
        out_shape=jax.ShapeDtypeStruct((B, A), jnp.float32),
        grid_spec=pltpu.PrefetchScalarGridSpec(
            num_scalar_prefetch=0,
            grid=grid,
            in_specs=[
                pl.BlockSpec((tile, S), lambda i: (i, 0)),   # x: batch-tiled
                # Constant-index blocks below are fetched once and stay
                # VMEM-resident across grid steps (no re-issued DMAs).
                pl.BlockSpec((S, H), lambda i: (0, 0)),      # w1
                pl.BlockSpec((1, H), lambda i: (0, 0)),      # b1
                pl.BlockSpec((H, H), lambda i: (0, 0)),      # w2
                pl.BlockSpec((1, H), lambda i: (0, 0)),      # b2
                pl.BlockSpec((H, A), lambda i: (0, 0)),      # w3 (narrow, no pad)
                pl.BlockSpec((1, A), lambda i: (0, 0)),      # b3
            ],
            out_specs=pl.BlockSpec((tile, A), lambda i: (i, 0)),
        ),
        compiler_params=pltpu.CompilerParams(
            dimension_semantics=("parallel",),
            vmem_limit_bytes=48 * 1024 * 1024,   # big tiles fit even on v5e
        ),
    )(x, prep["w1"], prep["b1"], prep["w2"], prep["b2"],
      prep["w3"], prep["b3"])

    return mean, sigma


def policy_forward_ref(x, params):
    h1 = jnp.tanh(x @ params["w1"].T + params["b1"])
    h2 = jnp.tanh(h1 @ params["w2"].T + params["b2"])
    mean = h2 @ params["w3"].T + params["b3"]
    sigma = jax.nn.softplus(params["sigma"])
    return mean, sigma


if __name__ == "__main__":
    state_space = 8
    action_space = 4

    key = jax.random.PRNGKey(0)
    k_params, k_x_small, k_x_mid, k_x_big = jax.random.split(key, 4)

    params = init_params(k_params, state_space, action_space)
    prep = prepare_params(params)   # one-time layout prep (not on hot path)

    # 1) Tiny per-step batch (single-env RL step) -> fused pure-JAX fast path.
    x_small = jax.random.normal(k_x_small, (8, state_space), jnp.float32)
    mean_s, sigma_s = policy_forward(x_small, prep)
    jax.block_until_ready((mean_s, sigma_s))
    mean_s_ref, sigma_ref = policy_forward_ref(x_small, params)
    assert mean_s.shape == (8, action_space)
    assert jnp.allclose(mean_s, mean_s_ref, atol=1e-4, rtol=1e-4)
    assert jnp.allclose(sigma_s, sigma_ref, atol=1e-6, rtol=1e-6)

    # 2) Rollout batch: Pallas kernel, 2 grid programs + partial final block.
    x_mid = jax.random.normal(k_x_mid, (300, state_space), jnp.float32)
    mean_m, _ = policy_forward(x_mid, prep)
    jax.block_until_ready(mean_m)
    mean_m_ref, _ = policy_forward_ref(x_mid, params)
    assert mean_m.shape == (300, action_space)
    assert jnp.allclose(mean_m, mean_m_ref, atol=1e-4, rtol=1e-4)

    # 3) Larger rollout: exercises the default 2048-row tile with a partial
    #    final block (2500 = 2048 + 452).
    x_big = jax.random.normal(k_x_big, (2500, state_space), jnp.float32)
    mean_b, _ = policy_forward(x_big, prep)
    jax.block_until_ready(mean_b)
    mean_b_ref, _ = policy_forward_ref(x_big, params)
    assert mean_b.shape == (2500, action_space)
    assert jnp.allclose(mean_b, mean_b_ref, atol=1e-4, rtol=1e-4)

    # TODO(synk): torch.distributions.Normal object itself has no Pallas
    # equivalent; kernel returns the distribution parameters (mean, sigma).
    print("KERNEL_OK")
</pallas_src>

<mosaic_0001>
module attributes {stable_mosaic.version = 11 : i64} {
  func.func @policy_kernel(%arg0: i32, %arg1: memref<152x8xf32, #tpu.memory_space<vmem>>, %arg2: memref<8x64xf32, #tpu.memory_space<vmem>>, %arg3: memref<1x64xf32, #tpu.memory_space<vmem>>, %arg4: memref<64x64xf32, #tpu.memory_space<vmem>>, %arg5: memref<1x64xf32, #tpu.memory_space<vmem>>, %arg6: memref<64x4xf32, #tpu.memory_space<vmem>>, %arg7: memref<1x4xf32, #tpu.memory_space<vmem>>, %arg8: memref<152x4xf32, #tpu.memory_space<vmem>>) attributes {dimension_semantics = [#tpu.dimension_semantics<parallel>], iteration_bounds = array<i64: 2>, scalar_prefetch = 0 : i64, scratch_operands = 0 : i64, tpu.core_type = #tpu.core_type<tc>, window_params = [{transform_indices = @transform_0, window_bounds = array<i64: 152, 8>}, {pipeline_mode = #tpu.pipeline_mode<synchronous>, transform_indices = @transform_1, window_bounds = array<i64: 8, 64>}, {pipeline_mode = #tpu.pipeline_mode<synchronous>, transform_indices = @transform_2, window_bounds = array<i64: 1, 64>}, {pipeline_mode = #tpu.pipeline_mode<synchronous>, transform_indices = @transform_3, window_bounds = array<i64: 64, 64>}, {pipeline_mode = #tpu.pipeline_mode<synchronous>, transform_indices = @transform_4, window_bounds = array<i64: 1, 64>}, {pipeline_mode = #tpu.pipeline_mode<synchronous>, transform_indices = @transform_5, window_bounds = array<i64: 64, 4>}, {pipeline_mode = #tpu.pipeline_mode<synchronous>, transform_indices = @transform_6, window_bounds = array<i64: 1, 4>}, {transform_indices = @transform_7, window_bounds = array<i64: 152, 4>}]} {
    %c0 = arith.constant 0 : index
    %c0_0 = arith.constant 0 : index
    %0 = vector.load %arg1[%c0, %c0_0] : memref<152x8xf32, #tpu.memory_space<vmem>>, vector<152x8xf32>
    %c0_1 = arith.constant 0 : index
    %c0_2 = arith.constant 0 : index
    %1 = vector.load %arg2[%c0_1, %c0_2] : memref<8x64xf32, #tpu.memory_space<vmem>>, vector<8x64xf32>
    %cst = arith.constant dense<0.000000e+00> : vector<152x64xf32>
    %2 = tpu.matmul %0, %1, %cst {dimension_numbers = #tpu.dot_dimension_numbers<[1], [0], [0], [1], [0, 0, 1, 1], [], []>} : vector<152x8xf32>, vector<8x64xf32>, vector<152x64xf32> -> vector<152x64xf32>
    %c0_3 = arith.constant 0 : index
    %c0_4 = arith.constant 0 : index
    %3 = vector.load %arg3[%c0_3, %c0_4] : memref<1x64xf32, #tpu.memory_space<vmem>>, vector<1x64xf32>
    %4 = vector.broadcast %3 : vector<1x64xf32> to vector<152x64xf32>
    %5 = arith.addf %2, %4 : vector<152x64xf32>
    %6 = math.tanh %5 : vector<152x64xf32>
    %c0_5 = arith.constant 0 : index
    %c0_6 = arith.constant 0 : index
    %7 = vector.load %arg4[%c0_5, %c0_6] : memref<64x64xf32, #tpu.memory_space<vmem>>, vector<64x64xf32>
    %cst_7 = arith.constant dense<0.000000e+00> : vector<152x64xf32>
    %8 = tpu.matmul %6, %7, %cst_7 {dimension_numbers = #tpu.dot_dimension_numbers<[1], [0], [0], [1], [0, 0, 1, 1], [], []>} : vector<152x64xf32>, vector<64x64xf32>, vector<152x64xf32> -> vector<152x64xf32>
    %c0_8 = arith.constant 0 : index
    %c0_9 = arith.constant 0 : index
    %9 = vector.load %arg5[%c0_8, %c0_9] : memref<1x64xf32, #tpu.memory_space<vmem>>, vector<1x64xf32>
    %10 = vector.broadcast %9 : vector<1x64xf32> to vector<152x64xf32>
    %11 = arith.addf %8, %10 : vector<152x64xf32>
    %12 = math.tanh %11 : vector<152x64xf32>
    %c0_10 = arith.constant 0 : index
    %c0_11 = arith.constant 0 : index
    %13 = vector.load %arg6[%c0_10, %c0_11] : memref<64x4xf32, #tpu.memory_space<vmem>>, vector<64x4xf32>
    %cst_12 = arith.constant dense<0.000000e+00> : vector<152x4xf32>
    %14 = tpu.matmul %12, %13, %cst_12 {dimension_numbers = #tpu.dot_dimension_numbers<[1], [0], [0], [1], [0, 0, 1, 1], [], []>} : vector<152x64xf32>, vector<64x4xf32>, vector<152x4xf32> -> vector<152x4xf32>
    %c0_13 = arith.constant 0 : index
    %c0_14 = arith.constant 0 : index
    %15 = vector.load %arg7[%c0_13, %c0_14] : memref<1x4xf32, #tpu.memory_space<vmem>>, vector<1x4xf32>
    %16 = vector.broadcast %15 : vector<1x4xf32> to vector<152x4xf32>
    %17 = arith.addf %14, %16 : vector<152x4xf32>
    %c0_15 = arith.constant 0 : index
    %c0_16 = arith.constant 0 : index
    %18 = vector.load %arg8[%c0_15, %c0_16] : memref<152x4xf32, #tpu.memory_space<vmem>>, vector<152x4xf32>
    tpu.vector_store %arg8[%c0_15, %c0_16], %17 {strides = array<i32>} : memref<152x4xf32, #tpu.memory_space<vmem>>, vector<152x4xf32>,
    return
  }
  func.func @transform_0(%arg0: i32) -> (i32, i32) {
    %c0_i32 = arith.constant 0 : i32
    %c0_i32_0 = arith.constant 0 : i32
    return %arg0, %c0_i32 : i32, i32
  }
  func.func @transform_1(%arg0: i32) -> (i32, i32) {
    %c0_i32 = arith.constant 0 : i32
    %c0_i32_0 = arith.constant 0 : i32
    %c0_i32_1 = arith.constant 0 : i32
    return %c0_i32, %c0_i32_0 : i32, i32
  }
  func.func @transform_2(%arg0: i32) -> (i32, i32) {
    %c0_i32 = arith.constant 0 : i32
    %c0_i32_0 = arith.constant 0 : i32
    %c0_i32_1 = arith.constant 0 : i32
    return %c0_i32, %c0_i32_0 : i32, i32
  }
  func.func @transform_3(%arg0: i32) -> (i32, i32) {
    %c0_i32 = arith.constant 0 : i32
    %c0_i32_0 = arith.constant 0 : i32
    %c0_i32_1 = arith.constant 0 : i32
    return %c0_i32, %c0_i32_0 : i32, i32
  }
  func.func @transform_4(%arg0: i32) -> (i32, i32) {
    %c0_i32 = arith.constant 0 : i32
    %c0_i32_0 = arith.constant 0 : i32
    %c0_i32_1 = arith.constant 0 : i32
    return %c0_i32, %c0_i32_0 : i32, i32
  }
  func.func @transform_5(%arg0: i32) -> (i32, i32) {
    %c0_i32 = arith.constant 0 : i32
    %c0_i32_0 = arith.constant 0 : i32
    %c0_i32_1 = arith.constant 0 : i32
    return %c0_i32, %c0_i32_0 : i32, i32
  }
  func.func @transform_6(%arg0: i32) -> (i32, i32) {
    %c0_i32 = arith.constant 0 : i32
    %c0_i32_0 = arith.constant 0 : i32
    %c0_i32_1 = arith.constant 0 : i32
    return %c0_i32, %c0_i32_0 : i32, i32
  }
  func.func @transform_7(%arg0: i32) -> (i32, i32) {
    %c0_i32 = arith.constant 0 : i32
    %c0_i32_0 = arith.constant 0 : i32
    return %arg0, %c0_i32 : i32, i32
  }
}

</mosaic_0001>

<llo_original>
// kernel: tpu_custom_call.1
$region0: #{tpu_custom_call.1}
  #allocation0 [shape = 'u32[]', space=smem, size = 0x4, offset = 0x4, fixed_abs, tag = 'smem constant byte address 0x4 - core index']
  #allocation1 [shape = 'u32[144,128]{1,0:T(1,128)}', space=vmem, size = 0x12000, scoped, tag = 'internal scratch']
  %s0 = inlined_call_operand.vmem [shape: f32[300,8], index: 0, kind: input, shape index: {}]
  %s1 = inlined_call_operand.vmem [shape: f32[8,64], index: 1, kind: input, shape index: {}]
  %s2 = inlined_call_operand.vmem [shape: f32[1,64], index: 2, kind: input, shape index: {}]
  %s3 = inlined_call_operand.vmem [shape: f32[64,64], index: 3, kind: input, shape index: {}]
  %s4 = inlined_call_operand.vmem [shape: f32[1,64], index: 4, kind: input, shape index: {}]
  %s5 = inlined_call_operand.vmem [shape: f32[64,4], index: 5, kind: input, shape index: {}]
  %s6 = inlined_call_operand.vmem [shape: f32[1,4], index: 6, kind: input, shape index: {}]
  %s7 = inlined_call_operand.vmem [shape: f32[300,4], index: 7, kind: output, shape index: {}]
  %s8 = sld [smem:[#allocation0]]
  $region61: #{tpu_custom_call.1} parent=0
    _
  %s10 = ssub.s32 1, %s8
  %s11 = scalar_select 0, %s10, %s8
  loop: start=0, step=1, limit=4
  $region2: #{tpu_custom_call.1} parent=0 // loop_pre_header
    _
  $region3: #{tpu_custom_call.1} parent=0 // loop_header
    %s13 = sphi 0, %s17
    %p14 = scmp.ge.s32.totalorder %s13, 4
    %s23 = sphi 0, %s25
    %s26 = sphi 0, %s23
    %s27 = sphi 0, %s26
    %s43 = sphi 0, %s27
    %s47 = sphi 0, %s47
    %s49 = sphi 0, %s47
    %s50 = sphi 0, %s49
    %s64 = sphi 0, %s50
    %s68 = sphi 0, %s68
    %s70 = sphi 0, %s68
    %s71 = sphi 0, %s70
    %s85 = sphi 0, %s71
    %s89 = sphi 0, %s89
    %s91 = sphi 0, %s89
    %s92 = sphi 0, %s91
    %s106 = sphi 0, %s92
    %s110 = sphi 0, %s110
    %s112 = sphi 0, %s110
    %s113 = sphi 0, %s112
    %s127 = sphi 0, %s113
    %s131 = sphi 0, %s131
    %s133 = sphi 0, %s131
    %s134 = sphi 0, %s133
    %s148 = sphi 0, %s134
    %s152 = sphi 0, %s152
    %s154 = sphi 0, %s152
    %s155 = sphi 0, %s154
    %s169 = sphi 0, %s155
    %s175 = sphi 0, %s177
    %s178 = sphi 0, %s175
    %s179 = sphi 0, %s178
    %s195 = sphi 0, %s179
  $region4: #{tpu_custom_call.1} parent=0 // loop_header_branch
    %16 = sbr.rel (%p14) target = $region8
  $region5: #{tpu_custom_call.1} parent=0 // loop_body
    %s18 = ssub.s32 %s13, 1
    %s19 = ssub.s32 %s13, 2
    %s20 = sadd.s32 %s13, 1
    %s21 = ssub.s32 %s13, %s20
    %p22 = scmp.eq.s32.totalorder %s21, 0
    %s24 = sadd.s32 %s23, 1
    %s25 = scalar_select %p22, %s23, %s24
    %p28 = pneg %p22
    %p29 = scmp.eq.s32.totalorder %s13, 1
    %p30 = por %p28, %p29
    %p31 = scmp.ne.s32.totalorder %s23, %s26
    %p32 = scmp.eq.s32.totalorder %s13, 0
    %p33 = por %p31, %p32
    %p34 = scmp.ne.s32.totalorder %s23, %s26
    %p35 = scmp.eq.s32.totalorder %s18, 1
    %p36 = por %p34, %p35
    %p37 = scmp.ne.s32.totalorder %s26, %s27
    %p38 = scmp.eq.s32.totalorder %s18, 0
    %p39 = por %p37, %p38
    %p40 = scmp.ne.s32.totalorder %s26, %s27
    %p41 = scmp.eq.s32.totalorder %s19, 1
    %p42 = por %p40, %p41
    %p44 = scmp.ne.s32.totalorder %s27, %s43
    %p45 = scmp.eq.s32.totalorder %s19, 0
    %p46 = por %p44, %p45
    %s48 = sadd.s32 %s47, 1
    %p51 = scmp.eq.s32.totalorder %s13, 1
    %p52 = scmp.ne.s32.totalorder %s47, %s49
    %p53 = scmp.eq.s32.totalorder %s13, 0
    %p54 = por %p52, %p53
    %p55 = scmp.ne.s32.totalorder %s47, %s49
    %p56 = scmp.eq.s32.totalorder %s18, 1
    %p57 = por %p55, %p56
    %p58 = scmp.ne.s32.totalorder %s49, %s50
    %p59 = scmp.eq.s32.totalorder %s18, 0
    %p60 = por %p58, %p59
    %p61 = scmp.ne.s32.totalorder %s49, %s50
    %p62 = scmp.eq.s32.totalorder %s19, 1
    %p63 = por %p61, %p62
    %p65 = scmp.ne.s32.totalorder %s50, %s64
    %p66 = scmp.eq.s32.totalorder %s19, 0
    %p67 = por %p65, %p66
    %s69 = sadd.s32 %s68, 1
    %p72 = scmp.eq.s32.totalorder %s13, 1
    %p73 = scmp.ne.s32.totalorder %s68, %s70
    %p74 = scmp.eq.s32.totalorder %s13, 0
    %p75 = por %p73, %p74
    %p76 = scmp.ne.s32.totalorder %s68, %s70
    %p77 = scmp.eq.s32.totalorder %s18, 1
    %p78 = por %p76, %p77
    %p79 = scmp.ne.s32.totalorder %s70, %s71
    %p80 = scmp.eq.s32.totalorder %s18, 0
    %p81 = por %p79, %p80
    %p82 = scmp.ne.s32.totalorder %s70, %s71
    %p83 = scmp.eq.s32.totalorder %s19, 1
    %p84 = por %p82, %p83
    %p86 = scmp.ne.s32.totalorder %s71, %s85
    %p87 = scmp.eq.s32.totalorder %s19, 0
    %p88 = por %p86, %p87
    %s90 = sadd.s32 %s89, 1
    %p93 = scmp.eq.s32.totalorder %s13, 1
    %p94 = scmp.ne.s32.totalorder %s89, %s91
    %p95 = scmp.eq.s32.totalorder %s13, 0
    %p96 = por %p94, %p95
    %p97 = scmp.ne.s32.totalorder %s89, %s91
    %p98 = scmp.eq.s32.totalorder %s18, 1
    %p99 = por %p97, %p98
    %p100 = scmp.ne.s32.totalorder %s91, %s92
    %p101 = scmp.eq.s32.totalorder %s18, 0
    %p102 = por %p100, %p101
    %p103 = scmp.ne.s32.totalorder %s91, %s92
    %p104 = scmp.eq.s32.totalorder %s19, 1
    %p105 = por %p103, %p104
    %p107 = scmp.ne.s32.totalorder %s92, %s106
    %p108 = scmp.eq.s32.totalorder %s19, 0
    %p109 = por %p107, %p108
    %s111 = sadd.s32 %s110, 1
    %p114 = scmp.eq.s32.totalorder %s13, 1
    %p115 = scmp.ne.s32.totalorder %s110, %s112
    %p116 = scmp.eq.s32.totalorder %s13, 0
    %p117 = por %p115, %p116
    %p118 = scmp.ne.s32.totalorder %s110, %s112
    %p119 = scmp.eq.s32.totalorder %s18, 1
    %p120 = por %p118, %p119
    %p121 = scmp.ne.s32.totalorder %s112, %s113
    %p122 = scmp.eq.s32.totalorder %s18, 0
    %p123 = por %p121, %p122
    %p124 = scmp.ne.s32.totalorder %s112, %s113
    %p125 = scmp.eq.s32.totalorder %s19, 1
    %p126 = por %p124, %p125
    %p128 = scmp.ne.s32.totalorder %s113, %s127
    %p129 = scmp.eq.s32.totalorder %s19, 0
    %p130 = por %p128, %p129
    %s132 = sadd.s32 %s131, 1
    %p135 = scmp.eq.s32.totalorder %s13, 1
    %p136 = scmp.ne.s32.totalorder %s131, %s133
    %p137 = scmp.eq.s32.totalorder %s13, 0
    %p138 = por %p136, %p137
    %p139 = scmp.ne.s32.totalorder %s131, %s133
    %p140 = scmp.eq.s32.totalorder %s18, 1
    %p141 = por %p139, %p140
    %p142 = scmp.ne.s32.totalorder %s133, %s134
    %p143 = scmp.eq.s32.totalorder %s18, 0
    %p144 = por %p142, %p143
    %p145 = scmp.ne.s32.totalorder %s133, %s134
    %p146 = scmp.eq.s32.totalorder %s19, 1
    %p147 = por %p145, %p146
    %p149 = scmp.ne.s32.totalorder %s134, %s148
    %p150 = scmp.eq.s32.totalorder %s19, 0
    %p151 = por %p149, %p150
    %s153 = sadd.s32 %s152, 1
    %p156 = scmp.eq.s32.totalorder %s13, 1
    %p157 = scmp.ne.s32.totalorder %s152, %s154
    %p158 = scmp.eq.s32.totalorder %s13, 0
    %p159 = por %p157, %p158
    %p160 = scmp.ne.s32.totalorder %s152, %s154
    %p161 = scmp.eq.s32.totalorder %s18, 1
    %p162 = por %p160, %p161
    %p163 = scmp.ne.s32.totalorder %s154, %s155
    %p164 = scmp.eq.s32.totalorder %s18, 0
    %p165 = por %p163, %p164
    %p166 = scmp.ne.s32.totalorder %s154, %s155
    %p167 = scmp.eq.s32.totalorder %s19, 1
    %p168 = por %p166, %p167
    %p170 = scmp.ne.s32.totalorder %s155, %s169
    %p171 = scmp.eq.s32.totalorder %s19, 0
    %p172 = por %p170, %p171
    %s173 = ssub.s32 %s13, %s20
    %p174 = scmp.eq.s32.totalorder %s173, 0
    %s176 = sadd.s32 %s175, 1
    %s177 = scalar_select %p174, %s175, %s176
    %p180 = pneg %p174
    %p181 = scmp.eq.s32.totalorder %s13, 1
    %p182 = por %p180, %p181
    %p183 = scmp.ne.s32.totalorder %s175, %s178
    %p184 = scmp.eq.s32.totalorder %s13, 0
    %p185 = por %p183, %p184
    %p186 = scmp.ne.s32.totalorder %s175, %s178
    %p187 = scmp.eq.s32.totalorder %s18, 1
    %p188 = por %p186, %p187
    %p189 = scmp.ne.s32.totalorder %s178, %s179
    %p190 = scmp.eq.s32.totalorder %s18, 0
    %p191 = por %p189, %p190
    %p192 = scmp.ne.s32.totalorder %s178, %s179
    %p193 = scmp.eq.s32.totalorder %s19, 1
    %p194 = por %p192, %p193
    %p196 = scmp.ne.s32.totalorder %s179, %s195
    %p197 = scmp.eq.s32.totalorder %s19, 0
    %p198 = por %p196, %p197
    %p199 = scmp.le.s32.totalorder 1, %s13
    %p200 = scmp.lt.s32.totalorder %s13, 3
    %p201 = pnand %p199, %p200
    %p202 = pneg %p201
    // Predicated region
    $region9: #{tpu_custom_call.1} parent=5 // pred_check
      _
    $region10: #{tpu_custom_call.1} parent=5 // pred_check_branch
      %204 = sbr.rel (%p201) target = $region12
    $region11: #{tpu_custom_call.1} parent=5 // pred_region
      %s205 = ssub.s32 %s13, 1
      // Predicated region
      $region13: #{tpu_custom_call.1} parent=11 // pred_check
        %p206 = pneg %p60
      $region14: #{tpu_custom_call.1} parent=11 // pred_check_branch
        %208 = sbr.rel (%p206) target = $region16
      $region15: #{tpu_custom_call.1} parent=11 // pred_region
        _
      $region16: #{tpu_custom_call.1} parent=11 // pred_fallthru
        _
      // Predicated region
      $region17: #{tpu_custom_call.1} parent=11 // pred_check
        %p209 = pneg %p81
      $region18: #{tpu_custom_call.1} parent=11 // pred_check_branch
        %211 = sbr.rel (%p209) target = $region20
      $region19: #{tpu_custom_call.1} parent=11 // pred_region
        _
      $region20: #{tpu_custom_call.1} parent=11 // pred_fallthru
        _
      // Predicated region
      $region21: #{tpu_custom_call.1} parent=11 // pred_check
        %p212 = pneg %p102
      $region22: #{tpu_custom_call.1} parent=11 // pred_check_branch
        %214 = sbr.rel (%p212) target = $region24
      $region23: #{tpu_custom_call.1} parent=11 // pred_region
        _
      $region24: #{tpu_custom_call.1} parent=11 // pred_fallthru
        _
      // Predicated region
      $region25: #{tpu_custom_call.1} parent=11 // pred_check
        %p215 = pneg %p123
      $region26: #{tpu_custom_call.1} parent=11 // pred_check_branch
        %217 = sbr.rel (%p215) target = $region28
      $region27: #{tpu_custom_call.1} parent=11 // pred_region
        _
      $region28: #{tpu_custom_call.1} parent=11 // pred_fallthru
        _
      // Predicated region
      $region29: #{tpu_custom_call.1} parent=11 // pred_check
        %p218 = pneg %p144
      $region30: #{tpu_custom_call.1} parent=11 // pred_check_branch
        %220 = sbr.rel (%p218) target = $region32
      $region31: #{tpu_custom_call.1} parent=11 // pred_region
        _
      $region32: #{tpu_custom_call.1} parent=11 // pred_fallthru
        _
      // Predicated region
      $region33: #{tpu_custom_call.1} parent=11 // pred_check
        %p221 = pneg %p165
      $region34: #{tpu_custom_call.1} parent=11 // pred_check_branch
        %223 = sbr.rel (%p221) target = $region36
      $region35: #{tpu_custom_call.1} parent=11 // pred_region
        _
      $region36: #{tpu_custom_call.1} parent=11 // pred_fallthru
        _
    $region12: #{tpu_custom_call.1} parent=5 // pred_fallthru
      _
    %p224 = scmp.lt.s32.totalorder %s13, 2
    // Predicated region
    $region37: #{tpu_custom_call.1} parent=5 // pred_check
      %p225 = pneg %p224
    $region38: #{tpu_custom_call.1} parent=5 // pred_check_branch
      %227 = sbr.rel (%p225) target = $region40
    $region39: #{tpu_custom_call.1} parent=5 // pred_region
      // Predicated region
      $region41: #{tpu_custom_call.1} parent=39 // pred_check
        %p228 = pneg %p33
      $region42: #{tpu_custom_call.1} parent=39 // pred_check_branch
        %230 = sbr.rel (%p228) target = $region44
      $region43: #{tpu_custom_call.1} parent=39 // pred_region
        %s231 = smul.u32 19, %s13
        %p232 = scmp.lt.s32.totalorder %s231, 37
        %s233 = scalar_select %p232, %s231, 37
        %s234 = smul.addr %s233, 8
        %s235 = scalar_lea.vmem %s0, %s234
        %s236 = smul.u32 19, %s13
      $region44: #{tpu_custom_call.1} parent=39 // pred_fallthru
        _
    $region40: #{tpu_custom_call.1} parent=5 // pred_fallthru
      _
    %p237 = scmp.le.s32.totalorder 1, %s13
    %p238 = scmp.lt.s32.totalorder %s13, 3
    %p239 = pnand %p237, %p238
    %p240 = pneg %p239
    // Predicated region
    $region45: #{tpu_custom_call.1} parent=5 // pred_check
      _
    $region46: #{tpu_custom_call.1} parent=5 // pred_check_branch
      %242 = sbr.rel (%p239) target = $region48
    $region47: #{tpu_custom_call.1} parent=5 // pred_region
      %s243 = ssub.s32 %s13, 1
      %s244 = smul.u32 19, %s18
      %p245 = scmp.lt.s32.totalorder %s244, 37
      %s246 = scalar_select %p245, %s244, 37
      %s247 = smul.addr %s246, 8
      %s248 = scalar_lea.vmem %s0, %s247
      %p249 = pneg %p39
      %p250 = pneg %p36
      %p251 = pneg %p60
      %p252 = pneg %p57
      %p253 = pneg %p81
      %p254 = pneg %p78
      %p255 = pneg %p102
      %p256 = pneg %p99
      %p257 = pneg %p123
      %p258 = pneg %p120
      %p259 = pneg %p144
      %p260 = pneg %p141
      %p261 = pneg %p165
      %p262 = pneg %p162
      %p263 = pneg %p191
      %p264 = pneg %p188
      %s265 = smul.u32 19, %s18
      %p266 = scmp.lt.s32.totalorder %s265, 37
      %s267 = scalar_select %p266, %s265, 37
      %s268 = smul.addr %s267, 8
      %s269 = scalar_lea.vmem %s7, %s268
      %s270 = smul.u32 19, %s18
      %p271 = scmp.lt.s32.totalorder %s270, 37
      %s272 = scalar_select %p271, %s270, 37
      %s273 = smul.addr %s272, 8
      %s274 = scalar_lea.vmem %s0, %s273
      %s275 = smul.u32 19, %s18
      %s276 = smul.u32 19, %s18
      %p277 = scmp.lt.s32.totalorder %s276, 37
      %s278 = scalar_select %p277, %s276, 37
      %s279 = smul.addr %s278, 8
      %s280 = scalar_lea.vmem %s7, %s279
      %s281 = smul.u32 19, %s18
      %v282 = vld [vmem:[%s274] sm:$0xff]
      %v283 = vld [vmem:[%s274 + $0x8] sm:$0xff]
      %v284 = vld [vmem:[%s274 + $0x10] sm:$0xff]
      %v285 = vld [vmem:[%s274 + $0x18] sm:$0xff]
      %v286 = vld [vmem:[%s274 + $0x20] sm:$0xff]
      %v287 = vld [vmem:[%s274 + $0x28] sm:$0xff]
      %v288 = vld [vmem:[%s274 + $0x30] sm:$0xff]
      %v289 = vld [vmem:[%s274 + $0x38] sm:$0xff]
      %v290 = vld [vmem:[%s274 + $0x40] sm:$0xff]
      %v291 = vld [vmem:[%s274 + $0x48] sm:$0xff]
      %v292 = vld [vmem:[%s274 + $0x50] sm:$0xff]
      %v293 = vld [vmem:[%s274 + $0x58] sm:$0xff]
      %v294 = vld [vmem:[%s274 + $0x60] sm:$0xff]
      %v295 = vld [vmem:[%s274 + $0x68] sm:$0xff]
      %v296 = vld [vmem:[%s274 + $0x70] sm:$0xff]
      %v297 = vld [vmem:[%s274 + $0x78] sm:$0xff]
      %v298 = vld [vmem:[%s274 + $0x80] sm:$0xff]
      %v299 = vld [vmem:[%s274 + $0x88] sm:$0xff]
      %v300 = vld [vmem:[%s274 + $0x90] sm:$0xff]
      %v301 = vld [vmem:[%s1] sm:$0xff]
      %v302 = vld [vmem:[%s2] sm:$0x1]
      %v304 = vlaneseq
      %v305 = vshrl.u32 %v304, 7
      %v306 = vsub.s32 0, %v305
      %v307 = vrot.slane %v302, %v306
      %vm309 = vcmask 64512
      %v311 = vsel %vm309, %v282, 0
      %v314 = vsel %vm309, %v283, 0
      %v317 = vsel %vm309, %v284, 0
      %v320 = vsel %vm309, %v285, 0
      %v323 = vsel %vm309, %v286, 0
      %v326 = vsel %vm309, %v287, 0
      %v329 = vsel %vm309, %v288, 0
      %v332 = vsel %vm309, %v289, 0
      %v335 = vsel %vm309, %v290, 0
      %v338 = vsel %vm309, %v291, 0
      %v341 = vsel %vm309, %v292, 0
      %v344 = vsel %vm309, %v293, 0
      %v347 = vsel %vm309, %v294, 0
      %v350 = vsel %vm309, %v295, 0
      %v353 = vsel %vm309, %v296, 0
      %v356 = vsel %vm309, %v297, 0
      %v359 = vsel %vm309, %v298, 0
      %v362 = vsel %vm309, %v299, 0
      %v365 = vsel %vm309, %v300, 0
      %367 = vmatprep.subr.mxu0 0.0
      %368 = vmatpush1.msra.mxu0 %v301
      %369 = vmatprep.subr.mxu0 0.0
      %370 = vmatpush1.msra.mxu0 0.0
      %371 = vmatprep.subr.mxu0 0.0
      %372 = vmatpush1.msra.mxu0 0.0
      %373 = vmatprep.subr.mxu0 0.0
      %374 = vmatpush1.msra.mxu0 0.0
      %375 = vmatprep.subr.mxu0 0.0
      %376 = vmatpush1.msra.mxu0 0.0
      %377 = vmatprep.subr.mxu0 0.0
      %378 = vmatpush1.msra.mxu0 0.0
      %379 = vmatprep.subr.mxu0 0.0
      %380 = vmatpush1.msra.mxu0 0.0
      %381 = vmatprep.subr.mxu0 0.0
      %382 = vmatpush1.msra.mxu0 0.0
      %383 = vmatprep.subr.mxu0 0.0
      %384 = vmatpush1.msra.mxu0 0.0
      %385 = vmatprep.subr.mxu0 0.0
      %386 = vmatpush1.msra.mxu0 0.0
      %387 = vmatprep.subr.mxu0 0.0
      %388 = vmatpush1.msra.mxu0 0.0
      %389 = vmatprep.subr.mxu0 0.0
      %390 = vmatpush1.msra.mxu0 0.0
      %391 = vmatprep.subr.mxu0 0.0
      %392 = vmatpush1.msra.mxu0 0.0
      %393 = vmatprep.subr.mxu0 0.0
      %394 = vmatpush1.msra.mxu0 0.0
      %395 = vmatprep.subr.mxu0 0.0
      %396 = vmatpush1.msra.mxu0 0.0
      %397 = vmatprep.subr.mxu0 0.0
      %398 = vmatpush1.msra.mxu0 0.0
      %399 = vmatprep.subr.mxu0 0.0
      %400 = vmatpush1.msra.mxu0 0.0
      %401 = vmatprep.subr.mxu0 0.0
      %402 = vmatpush1.msra.mxu0 0.0
      %403 = vmatprep.subr.mxu0 0.0
      %404 = vmatpush1.msra.mxu0 0.0
      %405 = vmatprep.subr.mxu0 0.0
      %406 = vmatpush1.msra.mxu0 0.0
      %407 = vmatprep.subr.mxu0 0.0
      %408 = vmatpush1.msra.mxu0 0.0
      %409 = vmatprep.subr.mxu0 0.0
      %410 = vmatpush1.msra.mxu0 0.0
      %411 = vmatprep.subr.mxu0 0.0
      %412 = vmatpush1.msra.mxu0 0.0
      %413 = vmatprep.subr.mxu0 0.0
      %414 = vmatpush1.msra.mxu0 0.0
      %415 = vmatprep.subr.mxu0 0.0
      %416 = vmatpush1.msra.mxu0 0.0
      %417 = vmatprep.subr.mxu0 0.0
      %418 = vmatpush1.msra.mxu0 0.0
      %419 = vmatprep.subr.mxu0 0.0
      %420 = vmatpush1.msra.mxu0 0.0
      %421 = vmatprep.subr.mxu0 0.0
      %422 = vmatpush1.msra.mxu0 0.0
      %423 = vmatprep.subr.mxu0 0.0
      %424 = vmatpush1.msra.mxu0 0.0
      %425 = vmatprep.subr.mxu0 0.0
      %426 = vmatpush1.msra.mxu0 0.0
      %427 = vmatprep.subr.mxu0 0.0
      %428 = vmatpush1.msra.mxu0 0.0
      %429 = vmatprep.subr.mxu0 0.0
      %430 = vmatpush1.msra.mxu0 0.0
      %431 = vmatprep.mubr.f32.mxu0 0.0
      %432 = vmatmul.mubr.f32.gmra.mrb[0].mxu0 %v311
      %v433 = vpop.f32.mrb[0].mxu0
      %v434 = vadd.f32 %v307, %v433
      %v435 = vpop.f32.mrb[0].mxu0
      %436 = vmatprep.mubr.f32.mxu0 0.0
      %437 = vmatmul.mubr.f32.gmra.mrb[0].mxu0 %v314
      %v438 = vpop.f32.mrb[0].mxu0
      %v439 = vadd.f32 %v307, %v438
      %v440 = vpop.f32.mrb[0].mxu0
      %441 = vmatprep.mubr.f32.mxu0 0.0
      %442 = vmatmul.mubr.f32.gmra.mrb[0].mxu0 %v317
      %v443 = vpop.f32.mrb[0].mxu0
      %v444 = vadd.f32 %v307, %v443
      %v445 = vpop.f32.mrb[0].mxu0
      %446 = vmatprep.mubr.f32.mxu0 0.0
      %447 = vmatmul.mubr.f32.gmra.mrb[0].mxu0 %v320
      %v448 = vpop.f32.mrb[0].mxu0
      %v449 = vadd.f32 %v307, %v448
      %v450 = vpop.f32.mrb[0].mxu0
      %451 = vmatprep.mubr.f32.mxu0 0.0
      %452 = vmatmul.mubr.f32.gmra.mrb[0].mxu0 %v323
      %v453 = vpop.f32.mrb[0].mxu0
      %v454 = vadd.f32 %v307, %v453
      %v455 = vpop.f32.mrb[0].mxu0
      %456 = vmatprep.mubr.f32.mxu0 0.0
      %457 = vmatmul.mubr.f32.gmra.mrb[0].mxu0 %v326
      %v458 = vpop.f32.mrb[0].mxu0
      %v459 = vadd.f32 %v307, %v458
      %v460 = vpop.f32.mrb[0].mxu0
      %461 = vmatprep.mubr.f32.mxu0 0.0
      %462 = vmatmul.mubr.f32.gmra.mrb[0].mxu0 %v329
      %v463 = vpop.f32.mrb[0].mxu0
      %v464 = vadd.f32 %v307, %v463
      %v465 = vpop.f32.mrb[0].mxu0
      %466 = vmatprep.mubr.f32.mxu0 0.0
      %467 = vmatmul.mubr.f32.gmra.mrb[0].mxu0 %v332
      %v468 = vpop.f32.mrb[0].mxu0
      %v469 = vadd.f32 %v307, %v468
      %v470 = vpop.f32.mrb[0].mxu0
      %471 = vmatprep.mubr.f32.mxu0 0.0
      %472 = vmatmul.mubr.f32.gmra.mrb[0].mxu0 %v335
      %v473 = vpop.f32.mrb[0].mxu0
      %v474 = vadd.f32 %v307, %v473
      %v475 = vpop.f32.mrb[0].mxu0
      %476 = vmatprep.mubr.f32.mxu0 0.0
      %477 = vmatmul.mubr.f32.gmra.mrb[0].mxu0 %v338
      %v478 = vpop.f32.mrb[0].mxu0
      %v479 = vadd.f32 %v307, %v478
      %v480 = vpop.f32.mrb[0].mxu0
      %481 = vmatprep.mubr.f32.mxu0 0.0
      %482 = vmatmul.mubr.f32.gmra.mrb[0].mxu0 %v341
      %v483 = vpop.f32.mrb[0].mxu0
      %v484 = vadd.f32 %v307, %v483
      %v485 = vpop.f32.mrb[0].mxu0
      %486 = vmatprep.mubr.f32.mxu0 0.0
      %487 = vmatmul.mubr.f32.gmra.mrb[0].mxu0 %v344
      %v488 = vpop.f32.mrb[0].mxu0
      %v489 = vadd.f32 %v307, %v488
      %v490 = vpop.f32.mrb[0].mxu0
      %491 = vmatprep.mubr.f32.mxu0 0.0
      %492 = vmatmul.mubr.f32.gmra.mrb[0].mxu0 %v347
      %v493 = vpop.f32.mrb[0].mxu0
      %v494 = vadd.f32 %v307, %v493
      %v495 = vpop.f32.mrb[0].mxu0
      %496 = vmatprep.mubr.f32.mxu0 0.0
      %497 = vmatmul.mubr.f32.gmra.mrb[0].mxu0 %v350
      %v498 = vpop.f32.mrb[0].mxu0
      %v499 = vadd.f32 %v307, %v498
      %v500 = vpop.f32.mrb[0].mxu0
      %501 = vmatprep.mubr.f32.mxu0 0.0
      %502 = vmatmul.mubr.f32.gmra.mrb[0].mxu0 %v353
      %v503 = vpop.f32.mrb[0].mxu0
      %v504 = vadd.f32 %v307, %v503
      %v505 = vpop.f32.mrb[0].mxu0
      %506 = vmatprep.mubr.f32.mxu0 0.0
      %507 = vmatmul.mubr.f32.gmra.mrb[0].mxu0 %v356
      %v508 = vpop.f32.mrb[0].mxu0
      %v509 = vadd.f32 %v307, %v508
      %v510 = vpop.f32.mrb[0].mxu0
      %511 = vmatprep.mubr.f32.mxu0 0.0
      %512 = vmatmul.mubr.f32.gmra.mrb[0].mxu0 %v359
      %v513 = vpop.f32.mrb[0].mxu0
      %v514 = vadd.f32 %v307, %v513
      %v515 = vpop.f32.mrb[0].mxu0
      %516 = vmatprep.mubr.f32.mxu0 0.0
      %517 = vmatmul.mubr.f32.gmra.mrb[0].mxu0 %v362
      %v518 = vpop.f32.mrb[0].mxu0
      %v519 = vadd.f32 %v307, %v518
      %v520 = vpop.f32.mrb[0].mxu0
      %521 = vmatprep.mubr.f32.mxu0 0.0
      %522 = vmatmul.mubr.f32.gmra.mrb[0].mxu0 %v365
      %v523 = vpop.f32.mrb[0].mxu0
      %v524 = vadd.f32 %v307, %v523
      %v525 = vpop.f32.mrb[0].mxu0
      %526 = vdwg.mxu0
      %v527 = vtanh.pop %v434
      %v528 = vtanh.pop %v439
      %v529 = vtanh.pop %v444
      %v530 = vtanh.pop %v449
      %v531 = vtanh.pop %v454
      %v532 = vtanh.pop %v459
      %v533 = vtanh.pop %v464
      %v534 = vtanh.pop %v469
      %v535 = vtanh.pop %v474
      %v536 = vtanh.pop %v479
      %v537 = vtanh.pop %v484
      %v538 = vtanh.pop %v489
      %v539 = vtanh.pop %v494
      %v540 = vtanh.pop %v499
      %v541 = vtanh.pop %v504
      %v542 = vtanh.pop %v509
      %v543 = vtanh.pop %v514
      %v544 = vtanh.pop %v519
      %v545 = vtanh.pop %v524
      %v546 = vld [vmem:[%s3] sm:$0xff]
      %v547 = vld [vmem:[%s3 + $0x8] sm:$0xff]
      %v548 = vld [vmem:[%s3 + $0x10] sm:$0xff]
      %v549 = vld [vmem:[%s3 + $0x18] sm:$0xff]
      %v550 = vld [vmem:[%s3 + $0x20] sm:$0xff]
      %v551 = vld [vmem:[%s3 + $0x28] sm:$0xff]
      %v552 = vld [vmem:[%s3 + $0x30] sm:$0xff]
      %v553 = vld [vmem:[%s3 + $0x38] sm:$0xff]
      %v554 = vld [vmem:[%s4] sm:$0x1]
      %v556 = vlaneseq
      %v557 = vshrl.u32 %v556, 7
      %v558 = vsub.s32 0, %v557
      %v559 = vrot.slane %v554, %v558
      %vm561 = vcmask 523264
      %v563 = vsel %vm561, %v527, 0
      %v566 = vsel %vm561, %v528, 0
      %v569 = vsel %vm561, %v529, 0
      %v572 = vsel %vm561, %v530, 0
      %v575 = vsel %vm561, %v531, 0
      %v578 = vsel %vm561, %v532, 0
      %v581 = vsel %vm561, %v533, 0
      %v584 = vsel %vm561, %v534, 0
      %v587 = vsel %vm561, %v535, 0
      %v590 = vsel %vm561, %v536, 0
      %v593 = vsel %vm561, %v537, 0
      %v596 = vsel %vm561, %v538, 0
      %v599 = vsel %vm561, %v539, 0
      %v602 = vsel %vm561, %v540, 0
      %v605 = vsel %vm561, %v541, 0
      %v608 = vsel %vm561, %v542, 0
      %v611 = vsel %vm561, %v543, 0
      %v614 = vsel %vm561, %v544, 0
      %v617 = vsel %vm561, %v545, 0
      %619 = vmatprep.subr.mxu0 0.0
      %620 = vmatpush1.msra.mxu0 %v546
      %621 = vmatprep.subr.mxu0 0.0
      %622 = vmatpush1.msra.mxu0 %v547
      %623 = vmatprep.subr.mxu0 0.0
      %624 = vmatpush1.msra.mxu0 %v548
      %625 = vmatprep.subr.mxu0 0.0
      %626 = vmatpush1.msra.mxu0 %v549
      %627 = vmatprep.subr.mxu0 0.0
      %628 = vmatpush1.msra.mxu0 %v550
      %629 = vmatprep.subr.mxu0 0.0
      %630 = vmatpush1.msra.mxu0 %v551
      %631 = vmatprep.subr.mxu0 0.0
      %632 = vmatpush1.msra.mxu0 %v552
      %633 = vmatprep.subr.mxu0 0.0
      %634 = vmatpush1.msra.mxu0 %v553
      %635 = vmatprep.subr.mxu0 0.0
      %636 = vmatpush1.msra.mxu0 0.0
      %637 = vmatprep.subr.mxu0 0.0
      %638 = vmatpush1.msra.mxu0 0.0
      %639 = vmatprep.subr.mxu0 0.0
      %640 = vmatpush1.msra.mxu0 0.0
      %641 = vmatprep.subr.mxu0 0.0
      %642 = vmatpush1.msra.mxu0 0.0
      %643 = vmatprep.subr.mxu0 0.0
      %644 = vmatpush1.msra.mxu0 0.0
      %645 = vmatprep.subr.mxu0 0.0
      %646 = vmatpush1.msra.mxu0 0.0
      %647 = vmatprep.subr.mxu0 0.0
      %648 = vmatpush1.msra.mxu0 0.0
      %649 = vmatprep.subr.mxu0 0.0
      %650 = vmatpush1.msra.mxu0 0.0
      %651 = vmatprep.subr.mxu0 0.0
      %652 = vmatpush1.msra.mxu0 0.0
      %653 = vmatprep.subr.mxu0 0.0
      %654 = vmatpush1.msra.mxu0 0.0
      %655 = vmatprep.subr.mxu0 0.0
      %656 = vmatpush1.msra.mxu0 0.0
      %657 = vmatprep.subr.mxu0 0.0
      %658 = vmatpush1.msra.mxu0 0.0
      %659 = vmatprep.subr.mxu0 0.0
      %660 = vmatpush1.msra.mxu0 0.0
      %661 = vmatprep.subr.mxu0 0.0
      %662 = vmatpush1.msra.mxu0 0.0
      %663 = vmatprep.subr.mxu0 0.0
      %664 = vmatpush1.msra.mxu0 0.0
      %665 = vmatprep.subr.mxu0 0.0
      %666 = vmatpush1.msra.mxu0 0.0
      %667 = vmatprep.subr.mxu0 0.0
      %668 = vmatpush1.msra.mxu0 0.0
      %669 = vmatprep.subr.mxu0 0.0
      %670 = vmatpush1.msra.mxu0 0.0
      %671 = vmatprep.subr.mxu0 0.0
      %672 = vmatpush1.msra.mxu0 0.0
      %673 = vmatprep.subr.mxu0 0.0
      %674 = vmatpush1.msra.mxu0 0.0
      %675 = vmatprep.subr.mxu0 0.0
      %676 = vmatpush1.msra.mxu0 0.0
      %677 = vmatprep.subr.mxu0 0.0
      %678 = vmatpush1.msra.mxu0 0.0
      %679 = vmatprep.subr.mxu0 0.0
      %680 = vmatpush1.msra.mxu0 0.0
      %681 = vmatprep.subr.mxu0 0.0
      %682 = vmatpush1.msra.mxu0 0.0
      %683 = vmatprep.mubr.f32.mxu0 0.0
      %684 = vmatmul.mubr.f32.gmra.mrb[0].mxu0 %v563
      %v685 = vpop.f32.mrb[0].mxu0
      %v686 = vadd.f32 %v559, %v685
      %v687 = vpop.f32.mrb[0].mxu0
      %688 = vmatprep.mubr.f32.mxu0 0.0
      %689 = vmatmul.mubr.f32.gmra.mrb[0].mxu0 %v566
      %v690 = vpop.f32.mrb[0].mxu0
      %v691 = vadd.f32 %v559, %v690
      %v692 = vpop.f32.mrb[0].mxu0
      %693 = vmatprep.mubr.f32.mxu0 0.0
      %694 = vmatmul.mubr.f32.gmra.mrb[0].mxu0 %v569
      %v695 = vpop.f32.mrb[0].mxu0
      %v696 = vadd.f32 %v559, %v695
      %v697 = vpop.f32.mrb[0].mxu0
      %698 = vmatprep.mubr.f32.mxu0 0.0
      %699 = vmatmul.mubr.f32.gmra.mrb[0].mxu0 %v572
      %v700 = vpop.f32.mrb[0].mxu0
      %v701 = vadd.f32 %v559, %v700
      %v702 = vpop.f32.mrb[0].mxu0
      %703 = vmatprep.mubr.f32.mxu0 0.0
      %704 = vmatmul.mubr.f32.gmra.mrb[0].mxu0 %v575
      %v705 = vpop.f32.mrb[0].mxu0
      %v706 = vadd.f32 %v559, %v705
      %v707 = vpop.f32.mrb[0].mxu0
      %708 = vmatprep.mubr.f32.mxu0 0.0
      %709 = vmatmul.mubr.f32.gmra.mrb[0].mxu0 %v578
      %v710 = vpop.f32.mrb[0].mxu0
      %v711 = vadd.f32 %v559, %v710
      %v712 = vpop.f32.mrb[0].mxu0
      %713 = vmatprep.mubr.f32.mxu0 0.0
      %714 = vmatmul.mubr.f32.gmra.mrb[0].mxu0 %v581
      %v715 = vpop.f32.mrb[0].mxu0
      %v716 = vadd.f32 %v559, %v715
      %v717 = vpop.f32.mrb[0].mxu0
      %718 = vmatprep.mubr.f32.mxu0 0.0
      %719 = vmatmul.mubr.f32.gmra.mrb[0].mxu0 %v584
      %v720 = vpop.f32.mrb[0].mxu0
      %v721 = vadd.f32 %v559, %v720
      %v722 = vpop.f32.mrb[0].mxu0
      %723 = vmatprep.mubr.f32.mxu0 0.0
      %724 = vmatmul.mubr.f32.gmra.mrb[0].mxu0 %v587
      %v725 = vpop.f32.mrb[0].mxu0
      %v726 = vadd.f32 %v559, %v725
      %v727 = vpop.f32.mrb[0].mxu0
      %728 = vmatprep.mubr.f32.mxu0 0.0
      %729 = vmatmul.mubr.f32.gmra.mrb[0].mxu0 %v590
      %v730 = vpop.f32.mrb[0].mxu0
      %v731 = vadd.f32 %v559, %v730
      %v732 = vpop.f32.mrb[0].mxu0
      %733 = vmatprep.mubr.f32.mxu0 0.0
      %734 = vmatmul.mubr.f32.gmra.mrb[0].mxu0 %v593
      %v735 = vpop.f32.mrb[0].mxu0
      %v736 = vadd.f32 %v559, %v735
      %v737 = vpop.f32.mrb[0].mxu0
      %738 = vmatprep.mubr.f32.mxu0 0.0
      %739 = vmatmul.mubr.f32.gmra.mrb[0].mxu0 %v596
      %v740 = vpop.f32.mrb[0].mxu0
      %v741 = vadd.f32 %v559, %v740
      %v742 = vpop.f32.mrb[0].mxu0
      %743 = vmatprep.mubr.f32.mxu0 0.0
      %744 = vmatmul.mubr.f32.gmra.mrb[0].mxu0 %v599
      %v745 = vpop.f32.mrb[0].mxu0
      %v746 = vadd.f32 %v559, %v745
      %v747 = vpop.f32.mrb[0].mxu0
      %748 = vmatprep.mubr.f32.mxu0 0.0
      %749 = vmatmul.mubr.f32.gmra.mrb[0].mxu0 %v602
      %v750 = vpop.f32.mrb[0].mxu0
      %v751 = vadd.f32 %v559, %v750
      %v752 = vpop.f32.mrb[0].mxu0
      %753 = vmatprep.mubr.f32.mxu0 0.0
      %754 = vmatmul.mubr.f32.gmra.mrb[0].mxu0 %v605
      %v755 = vpop.f32.mrb[0].mxu0
      %v756 = vadd.f32 %v559, %v755
      %v757 = vpop.f32.mrb[0].mxu0
      %758 = vmatprep.mubr.f32.mxu0 0.0
      %759 = vmatmul.mubr.f32.gmra.mrb[0].mxu0 %v608
      %v760 = vpop.f32.mrb[0].mxu0
      %v761 = vadd.f32 %v559, %v760
      %v762 = vpop.f32.mrb[0].mxu0
      %763 = vmatprep.mubr.f32.mxu0 0.0
      %764 = vmatmul.mubr.f32.gmra.mrb[0].mxu0 %v611
      %v765 = vpop.f32.mrb[0].mxu0
      %v766 = vadd.f32 %v559, %v765
      %v767 = vpop.f32.mrb[0].mxu0
      %768 = vmatprep.mubr.f32.mxu0 0.0
      %769 = vmatmul.mubr.f32.gmra.mrb[0].mxu0 %v614
      %v770 = vpop.f32.mrb[0].mxu0
      %v771 = vadd.f32 %v559, %v770
      %v772 = vpop.f32.mrb[0].mxu0
      %773 = vmatprep.mubr.f32.mxu0 0.0
      %774 = vmatmul.mubr.f32.gmra.mrb[0].mxu0 %v617
      %v775 = vpop.f32.mrb[0].mxu0
      %v776 = vadd.f32 %v559, %v775
      %v777 = vpop.f32.mrb[0].mxu0
      %778 = vdwg.mxu0
      %v779 = vtanh.pop %v686
      %v780 = vtanh.pop %v691
      %v781 = vtanh.pop %v696
      %v782 = vtanh.pop %v701
      %v783 = vtanh.pop %v706
      %v784 = vtanh.pop %v711
      %v785 = vtanh.pop %v716
      %v786 = vtanh.pop %v721
      %v787 = vtanh.pop %v726
      %v788 = vtanh.pop %v731
      %v789 = vtanh.pop %v736
      %v790 = vtanh.pop %v741
      %v791 = vtanh.pop %v746
      %v792 = vtanh.pop %v751
      %v793 = vtanh.pop %v756
      %v794 = vtanh.pop %v761
      %v795 = vtanh.pop %v766
      %v796 = vtanh.pop %v771
      %v797 = vtanh.pop %v776
      %v798 = vld [vmem:[%s5] sm:$0xff]
      %v799 = vld [vmem:[%s5 + $0x8] sm:$0xff]
      %v800 = vld [vmem:[%s5 + $0x10] sm:$0xff]
      %v801 = vld [vmem:[%s5 + $0x18] sm:$0xff]
      %v802 = vld [vmem:[%s5 + $0x20] sm:$0xff]
      %v803 = vld [vmem:[%s5 + $0x28] sm:$0xff]
      %v804 = vld [vmem:[%s5 + $0x30] sm:$0xff]
      %v805 = vld [vmem:[%s5 + $0x38] sm:$0xff]
      %v806 = vld [vmem:[%s6] sm:$0x1]
      %v808 = vlaneseq
      %v809 = vshrl.u32 %v808, 7
      %v810 = vsub.s32 0, %v809
      %v811 = vrot.slane %v806, %v810
      %v814 = vsel %vm561, %v779, 0
      %v817 = vsel %vm561, %v780, 0
      %v820 = vsel %vm561, %v781, 0
      %v823 = vsel %vm561, %v782, 0
      %v826 = vsel %vm561, %v783, 0
      %v829 = vsel %vm561, %v784, 0
      %v832 = vsel %vm561, %v785, 0
      %v835 = vsel %vm561, %v786, 0
      %v838 = vsel %vm561, %v787, 0
      %v841 = vsel %vm561, %v788, 0
      %v844 = vsel %vm561, %v789, 0
      %v847 = vsel %vm561, %v790, 0
      %v850 = vsel %vm561, %v791, 0
      %v853 = vsel %vm561, %v792, 0
      %v856 = vsel %vm561, %v793, 0
      %v859 = vsel %vm561, %v794, 0
      %v862 = vsel %vm561, %v795, 0
      %v865 = vsel %vm561, %v796, 0
      %v868 = vsel %vm561, %v797, 0
      %870 = vmatprep.subr.mxu0 0.0
      %871 = vmatpush1.msra.mxu0 %v798
      %872 = vmatprep.subr.mxu0 0.0
      %873 = vmatpush1.msra.mxu0 %v799
      %874 = vmatprep.subr.mxu0 0.0
      %875 = vmatpush1.msra.mxu0 %v800
      %876 = vmatprep.subr.mxu0 0.0
      %877 = vmatpush1.msra.mxu0 %v801
      %878 = vmatprep.subr.mxu0 0.0
      %879 = vmatpush1.msra.mxu0 %v802
      %880 = vmatprep.subr.mxu0 0.0
      %881 = vmatpush1.msra.mxu0 %v803
      %882 = vmatprep.subr.mxu0 0.0
      %883 = vmatpush1.msra.mxu0 %v804
      %884 = vmatprep.subr.mxu0 0.0
      %885 = vmatpush1.msra.mxu0 %v805
      %886 = vmatprep.subr.mxu0 0.0
      %887 = vmatpush1.msra.mxu0 0.0
      %888 = vmatprep.subr.mxu0 0.0
      %889 = vmatpush1.msra.mxu0 0.0
      %890 = vmatprep.subr.mxu0 0.0
      %891 = vmatpush1.msra.mxu0 0.0
      %892 = vmatprep.subr.mxu0 0.0
      %893 = vmatpush1.msra.mxu0 0.0
      %894 = vmatprep.subr.mxu0 0.0
      %895 = vmatpush1.msra.mxu0 0.0
      %896 = vmatprep.subr.mxu0 0.0
      %897 = vmatpush1.msra.mxu0 0.0
      %898 = vmatprep.subr.mxu0 0.0
      %899 = vmatpush1.msra.mxu0 0.0
      %900 = vmatprep.subr.mxu0 0.0
      %901 = vmatpush1.msra.mxu0 0.0
      %902 = vmatprep.subr.mxu0 0.0
      %903 = vmatpush1.msra.mxu0 0.0
      %904 = vmatprep.subr.mxu0 0.0
      %905 = vmatpush1.msra.mxu0 0.0
      %906 = vmatprep.subr.mxu0 0.0
      %907 = vmatpush1.msra.mxu0 0.0
      %908 = vmatprep.subr.mxu0 0.0
      %909 = vmatpush1.msra.mxu0 0.0
      %910 = vmatprep.subr.mxu0 0.0
      %911 = vmatpush1.msra.mxu0 0.0
      %912 = vmatprep.subr.mxu0 0.0
      %913 = vmatpush1.msra.mxu0 0.0
      %914 = vmatprep.subr.mxu0 0.0
      %915 = vmatpush1.msra.mxu0 0.0
      %916 = vmatprep.subr.mxu0 0.0
      %917 = vmatpush1.msra.mxu0 0.0
      %918 = vmatprep.subr.mxu0 0.0
      %919 = vmatpush1.msra.mxu0 0.0
      %920 = vmatprep.subr.mxu0 0.0
      %921 = vmatpush1.msra.mxu0 0.0
      %922 = vmatprep.subr.mxu0 0.0
      %923 = vmatpush1.msra.mxu0 0.0
      %924 = vmatprep.subr.mxu0 0.0
      %925 = vmatpush1.msra.mxu0 0.0
      %926 = vmatprep.subr.mxu0 0.0
      %927 = vmatpush1.msra.mxu0 0.0
      %928 = vmatprep.subr.mxu0 0.0
      %929 = vmatpush1.msra.mxu0 0.0
      %930 = vmatprep.subr.mxu0 0.0
      %931 = vmatpush1.msra.mxu0 0.0
      %932 = vmatprep.subr.mxu0 0.0
      %933 = vmatpush1.msra.mxu0 0.0
      %934 = vmatprep.mubr.f32.mxu0 0.0
      %935 = vmatmul.mubr.f32.gmra.mrb[0].mxu0 %v814
      %v936 = vpop.f32.mrb[0].mxu0
      %v937 = vadd.f32 %v811, %v936
      %v938 = vpop.f32.mrb[0].mxu0
      %939 = vmatprep.mubr.f32.mxu0 0.0
      %940 = vmatmul.mubr.f32.gmra.mrb[0].mxu0 %v817
      %v941 = vpop.f32.mrb[0].mxu0
      %v942 = vadd.f32 %v811, %v941
      %v943 = vpop.f32.mrb[0].mxu0
      %944 = vmatprep.mubr.f32.mxu0 0.0
      %945 = vmatmul.mubr.f32.gmra.mrb[0].mxu0 %v820
      %v946 = vpop.f32.mrb[0].mxu0
      %v947 = vadd.f32 %v811, %v946
      %v948 = vpop.f32.mrb[0].mxu0
      %949 = vmatprep.mubr.f32.mxu0 0.0
      %950 = vmatmul.mubr.f32.gmra.mrb[0].mxu0 %v823
      %v951 = vpop.f32.mrb[0].mxu0
      %v952 = vadd.f32 %v811, %v951
      %v953 = vpop.f32.mrb[0].mxu0
      %954 = vmatprep.mubr.f32.mxu0 0.0
      %955 = vmatmul.mubr.f32.gmra.mrb[0].mxu0 %v826
      %v956 = vpop.f32.mrb[0].mxu0
      %v957 = vadd.f32 %v811, %v956
      %v958 = vpop.f32.mrb[0].mxu0
      %959 = vmatprep.mubr.f32.mxu0 0.0
      %960 = vmatmul.mubr.f32.gmra.mrb[0].mxu0 %v829
      %v961 = vpop.f32.mrb[0].mxu0
      %v962 = vadd.f32 %v811, %v961
      %v963 = vpop.f32.mrb[0].mxu0
      %964 = vmatprep.mubr.f32.mxu0 0.0
      %965 = vmatmul.mubr.f32.gmra.mrb[0].mxu0 %v832
      %v966 = vpop.f32.mrb[0].mxu0
      %v967 = vadd.f32 %v811, %v966
      %v968 = vpop.f32.mrb[0].mxu0
      %969 = vmatprep.mubr.f32.mxu0 0.0
      %970 = vmatmul.mubr.f32.gmra.mrb[0].mxu0 %v835
      %v971 = vpop.f32.mrb[0].mxu0
      %v972 = vadd.f32 %v811, %v971
      %v973 = vpop.f32.mrb[0].mxu0
      %974 = vmatprep.mubr.f32.mxu0 0.0
      %975 = vmatmul.mubr.f32.gmra.mrb[0].mxu0 %v838
      %v976 = vpop.f32.mrb[0].mxu0
      %v977 = vadd.f32 %v811, %v976
      %v978 = vpop.f32.mrb[0].mxu0
      %979 = vmatprep.mubr.f32.mxu0 0.0
      %980 = vmatmul.mubr.f32.gmra.mrb[0].mxu0 %v841
      %v981 = vpop.f32.mrb[0].mxu0
      %v982 = vadd.f32 %v811, %v981
      %v983 = vpop.f32.mrb[0].mxu0
      %984 = vmatprep.mubr.f32.mxu0 0.0
      %985 = vmatmul.mubr.f32.gmra.mrb[0].mxu0 %v844
      %v986 = vpop.f32.mrb[0].mxu0
      %v987 = vadd.f32 %v811, %v986
      %v988 = vpop.f32.mrb[0].mxu0
      %989 = vmatprep.mubr.f32.mxu0 0.0
      %990 = vmatmul.mubr.f32.gmra.mrb[0].mxu0 %v847
      %v991 = vpop.f32.mrb[0].mxu0
      %v992 = vadd.f32 %v811, %v991
      %v993 = vpop.f32.mrb[0].mxu0
      %994 = vmatprep.mubr.f32.mxu0 0.0
      %995 = vmatmul.mubr.f32.gmra.mrb[0].mxu0 %v850
      %v996 = vpop.f32.mrb[0].mxu0
      %v997 = vadd.f32 %v811, %v996
      %v998 = vpop.f32.mrb[0].mxu0
      %999 = vmatprep.mubr.f32.mxu0 0.0
      %1000 = vmatmul.mubr.f32.gmra.mrb[0].mxu0 %v853
      %v1001 = vpop.f32.mrb[0].mxu0
      %v1002 = vadd.f32 %v811, %v1001
      %v1003 = vpop.f32.mrb[0].mxu0
      %1004 = vmatprep.mubr.f32.mxu0 0.0
      %1005 = vmatmul.mubr.f32.gmra.mrb[0].mxu0 %v856
      %v1006 = vpop.f32.mrb[0].mxu0
      %v1007 = vadd.f32 %v811, %v1006
      %v1008 = vpop.f32.mrb[0].mxu0
      %1009 = vmatprep.mubr.f32.mxu0 0.0
      %1010 = vmatmul.mubr.f32.gmra.mrb[0].mxu0 %v859
      %v1011 = vpop.f32.mrb[0].mxu0
      %v1012 = vadd.f32 %v811, %v1011
      %v1013 = vpop.f32.mrb[0].mxu0
      %1014 = vmatprep.mubr.f32.mxu0 0.0
      %1015 = vmatmul.mubr.f32.gmra.mrb[0].mxu0 %v862
      %v1016 = vpop.f32.mrb[0].mxu0
      %v1017 = vadd.f32 %v811, %v1016
      %v1018 = vpop.f32.mrb[0].mxu0
      %1019 = vmatprep.mubr.f32.mxu0 0.0
      %1020 = vmatmul.mubr.f32.gmra.mrb[0].mxu0 %v865
      %v1021 = vpop.f32.mrb[0].mxu0
      %v1022 = vadd.f32 %v811, %v1021
      %v1023 = vpop.f32.mrb[0].mxu0
      %1024 = vmatprep.mubr.f32.mxu0 0.0
      %1025 = vmatmul.mubr.f32.gmra.mrb[0].mxu0 %v868
      %v1026 = vpop.f32.mrb[0].mxu0
      %v1027 = vadd.f32 %v811, %v1026
      %v1028 = vpop.f32.mrb[0].mxu0
      %1029 = vdwg.mxu0
      %vm1030 = vcmask 31744
      %1031 = vst.msk [vmem:[%s280] sm:$0xff] %vm1030, %v937
      %1032 = vst.msk [vmem:[%s280 + $0x8] sm:$0xff] %vm1030, %v942
      %1033 = vst.msk [vmem:[%s280 + $0x10] sm:$0xff] %vm1030, %v947
      %1034 = vst.msk [vmem:[%s280 + $0x18] sm:$0xff] %vm1030, %v952
      %1035 = vst.msk [vmem:[%s280 + $0x20] sm:$0xff] %vm1030, %v957
      %1036 = vst.msk [vmem:[%s280 + $0x28] sm:$0xff] %vm1030, %v962
      %1037 = vst.msk [vmem:[%s280 + $0x30] sm:$0xff] %vm1030, %v967
      %1038 = vst.msk [vmem:[%s280 + $0x38] sm:$0xff] %vm1030, %v972
      %1039 = vst.msk [vmem:[%s280 + $0x40] sm:$0xff] %vm1030, %v977
      %1040 = vst.msk [vmem:[%s280 + $0x48] sm:$0xff] %vm1030, %v982
      %1041 = vst.msk [vmem:[%s280 + $0x50] sm:$0xff] %vm1030, %v987
      %1042 = vst.msk [vmem:[%s280 + $0x58] sm:$0xff] %vm1030, %v992
      %1043 = vst.msk [vmem:[%s280 + $0x60] sm:$0xff] %vm1030, %v997
      %1044 = vst.msk [vmem:[%s280 + $0x68] sm:$0xff] %vm1030, %v1002
      %1045 = vst.msk [vmem:[%s280 + $0x70] sm:$0xff] %vm1030, %v1007
      %1046 = vst.msk [vmem:[%s280 + $0x78] sm:$0xff] %vm1030, %v1012
      %1047 = vst.msk [vmem:[%s280 + $0x80] sm:$0xff] %vm1030, %v1017
      %1048 = vst.msk [vmem:[%s280 + $0x88] sm:$0xff] %vm1030, %v1022
      %1049 = vst.msk [vmem:[%s280 + $0x90] sm:$0xff] %vm1030, %v1027
      %s1050 = smul.u32 19, %s18
      %p1051 = scmp.lt.s32.totalorder %s1050, 37
      %s1052 = scalar_select %p1051, %s1050, 37
      %s1053 = smul.addr %s1052, 8
      %s1054 = scalar_lea.vmem %s7, %s1053
      // Predicated region
      $region49: #{tpu_custom_call.1} parent=47 // pred_check
        %p1055 = pneg %p188
      $region50: #{tpu_custom_call.1} parent=47 // pred_check_branch
        %1057 = sbr.rel (%p1055) target = $region52
      $region51: #{tpu_custom_call.1} parent=47 // pred_region
        %s1058 = smul.u32 19, %s18
      $region52: #{tpu_custom_call.1} parent=47 // pred_fallthru
        _
    $region48: #{tpu_custom_call.1} parent=5 // pred_fallthru
      _
    %p1059 = scmp.le.s32.totalorder 2, %s13
    // Predicated region
    $region53: #{tpu_custom_call.1} parent=5 // pred_check
      %p1060 = pneg %p1059
    $region54: #{tpu_custom_call.1} parent=5 // pred_check_branch
      %1062 = sbr.rel (%p1060) target = $region56
    $region55: #{tpu_custom_call.1} parent=5 // pred_region
      %s1063 = ssub.s32 %s13, 2
      // Predicated region
      $region57: #{tpu_custom_call.1} parent=55 // pred_check
        %p1064 = pneg %p194
      $region58: #{tpu_custom_call.1} parent=55 // pred_check_branch
        %1066 = sbr.rel (%p1064) target = $region60
      $region59: #{tpu_custom_call.1} parent=55 // pred_region
        %s1067 = smul.u32 19, %s19
        %p1068 = scmp.lt.s32.totalorder %s1067, 37
        %s1069 = scalar_select %p1068, %s1067, 37
        %s1070 = smul.addr %s1069, 8
        %s1071 = scalar_lea.vmem %s7, %s1070
      $region60: #{tpu_custom_call.1} parent=55 // pred_fallthru
        _
    $region56: #{tpu_custom_call.1} parent=5 // pred_fallthru
      _
  $region6: #{tpu_custom_call.1} parent=0 // loop_footer
    %s17 = sadd.s32 1, %s13
  $region7: #{tpu_custom_call.1} parent=0 // loop_footer_branch
    %12 = sbr.rel target = $region3
  $region8: #{tpu_custom_call.1} parent=0 // loop_exit
    _

</llo_original>
